<compile_context>
chip_gen: v6e
topology: v6e:2x2x1
jax: 0.10.0
libtpu: 0.0.40
codegen_flags: <defaults>
</compile_context>

<pallas_src>
import functools

import jax
import jax.numpy as jnp
from jax.experimental import pallas as pl
from jax.experimental.pallas import tpu as pltpu

BN_EPS = 1e-5


def _decoder_kernel(h1_ref, h2_ref, h3_ref, adj_ref, wprm_ref, out_ref, *, layout):
    """Fully fused 3-layer GAT decoder: 3x (GATConv + folded-BN [+ ELU]) + 2 skip adds."""
    adj = adj_ref[...]                                    # (N, N) f32 in {0,1}; adj[i,j] = edge j->i

    def gat_bn(x, spec):
        w_row, cin, c, v_row, apply_elu = spec
        # Static row/col slices of the single packed constant buffer.
        w_aug = wprm_ref[w_row:w_row + cin, 0:c + 1]      # (Cin, C+1) = [W*diag(bn_scale) | W@att_dst^T]
        asrc = wprm_ref[v_row:v_row + 1, 0:cin]           # (1, Cin)   = (W @ att_src^T)^T
        shift = wprm_ref[v_row + 1:v_row + 2, 0:c]        # (1, C)     = beta - mean*scale

        # One MXU pass -> BN-scaled transform AND the a_dst logits column.
        xw_aug = jnp.dot(x, w_aug, preferred_element_type=jnp.float32)   # (N, C+1)
        xw_s = xw_aug[:, 0:c]                             # (N, C), already * bn_scale
        a_dst = xw_aug[:, c:c + 1]                        # (N, 1)

        # a_src over source nodes as a (1, N) row; independent of xw_aug so it overlaps.
        # TODO(synk): could also be a tiny (N,1)->(1,N) transpose of an extra W_aug column.
        a_src = jax.lax.dot_general(asrc, x, (((1,), (1,)), ((), ())),
                                    preferred_element_type=jnp.float32)  # (1, N)

        # sigmoid logits are in (0,1] -> exp cannot overflow -> no max-subtraction.
        # adj is exactly {0,1} -> mask via multiply (no compare / vselect).
        p = adj * jnp.exp(jax.nn.sigmoid(a_dst + a_src))  # (N, N)
        denom = jnp.sum(p, axis=-1, keepdims=True)        # (N, 1); >= 1 for any row with an edge
        d = jnp.where(denom > 0.0, denom, 1.0)            # isolated node -> out row 0 -> y = shift
        inv = pl.reciprocal(d, approx=True)               # EUP vrcp (idle slot)
        inv = inv * (2.0 - d * inv)                       # one Newton-Raphson step -> ~f32 accuracy

        # Aggregate first, row-normalize after (scale factors out of the matmul);
        # folded eval-mode BatchNorm is just "+ shift" (scale already inside w_aug).
        y = jnp.dot(p, xw_s, preferred_element_type=jnp.float32) * inv + shift
        if apply_elu:
            # TODO(synk): switch to jnp.expm1 once Mosaic lowering for expm1 is confirmed;
            # exp(y)-1 is within ~1e-7 abs of torch F.elu here and is known to lower.
            y = jnp.where(y > 0.0, y, jnp.exp(y) - 1.0)
        return y

    h3_ = gat_bn(h3_ref[...], layout[0])
    h2_ = gat_bn(h3_ + h2_ref[...], layout[1])            # skip add, VMEM-resident
    h1_ = gat_bn(h2_ + h1_ref[...], layout[2])            # skip add, VMEM-resident
    out_ref[...] = h1_.astype(out_ref.dtype)


# ------------------------- host-side constant folding / packing -------------------------
def _fold_layer(w, att_src, att_dst, gamma, beta, mean, var):
    """Fold eval-BN scale and both attention vectors into the layer's weights."""
    scale = gamma * jax.lax.rsqrt(var + BN_EPS)                   # (1, C)
    shift = beta - mean * scale                                   # (1, C)
    w_aug = jnp.concatenate([w * scale, w @ att_dst.T], axis=1)   # (Cin, C+1)
    asrc_vec = (w @ att_src.T).T                                  # (1, Cin)
    return w_aug, asrc_vec, shift


def prepare_params(p, hidden_dims):
    """Pack all three layers' folded weights + vectors into ONE constant buffer.

    Row map (weight-block sublane offsets are multiples of 8):
      [0       : d3      )  w3_aug (d3, d2+1)
      [d3      : d3+d2   )  w2_aug (d2, d1+1)
      [d3+d2   : d3+d2+d1)  w1_aug (d1, d0+1)
      [rv+0] asrc3  [rv+1] shift3  [rv+2] asrc2  [rv+3] shift2  [rv+4] asrc1  [rv+5] shift1
    """
    d0, d1, d2, d3 = hidden_dims
    w3a, as3, sh3 = _fold_layer(p['w3'], p['as3'], p['ad3'], p['g3'], p['b3'], p['m3'], p['v3'])
    w2a, as2, sh2 = _fold_layer(p['w2'], p['as2'], p['ad2'], p['g2'], p['b2'], p['m2'], p['v2'])
    w1a, as1, sh1 = _fold_layer(p['w1'], p['as1'], p['ad1'], p['g1'], p['b1'], p['m1'], p['v1'])

    width = max(d3, d2 + 1, d1 + 1, d0 + 1)
    r3, r2, r1 = 0, d3, d3 + d2
    rv = -(-(r1 + d1) // 8) * 8                                  # round up to sublane multiple
    rows = -(-(rv + 6) // 8) * 8

    buf = jnp.zeros((rows, width), jnp.float32)
    buf = buf.at[r3:r3 + d3, 0:d2 + 1].set(w3a)
    buf = buf.at[r2:r2 + d2, 0:d1 + 1].set(w2a)
    buf = buf.at[r1:r1 + d1, 0:d0 + 1].set(w1a)
    buf = buf.at[rv + 0, 0:d3].set(as3[0])
    buf = buf.at[rv + 1, 0:d2].set(sh3[0])
    buf = buf.at[rv + 2, 0:d2].set(as2[0])
    buf = buf.at[rv + 3, 0:d1].set(sh2[0])
    buf = buf.at[rv + 4, 0:d1].set(as1[0])
    buf = buf.at[rv + 5, 0:d0].set(sh1[0])

    layout = ((r3, d3, d2, rv + 0, True),
              (r2, d2, d1, rv + 2, True),
              (r1, d1, d0, rv + 4, False))
    return buf, layout


def gate_decoder_3layers(h1, h2, h3, adj, wprm, layout):
    """h3 -> conv3_/bn3_/ELU -> (+h2) -> conv2_/bn2_/ELU -> (+h1) -> conv1_/bn1_"""
    n = h1.shape[0]
    d0 = layout[2][2]
    kernel = functools.partial(_decoder_kernel, layout=layout)
    vmem = pl.BlockSpec(memory_space=pltpu.MemorySpace.VMEM)
    # One launch, 5 input DMAs + 1 output DMA; everything stays VMEM-resident.
    return pl.pallas_call(
        kernel,
        out_shape=jax.ShapeDtypeStruct((n, d0), jnp.float32),
        in_specs=[vmem] * 5,
        out_specs=vmem,
    )(h1, h2, h3, adj, wprm)


# ----------------------------- reference (pure JAX, unfused) -----------------------------
def _ref_layer(x, w, a_s, a_d, adj, gamma, beta, mean, var, apply_elu):
    xw = x @ w
    asrc = jnp.sum(xw * a_s, axis=-1)            # (N,)
    adst = jnp.sum(xw * a_d, axis=-1)            # (N,)
    e = jax.nn.sigmoid(adst[:, None] + asrc[None, :])
    p = jnp.where(adj > 0, jnp.exp(e), 0.0)
    denom = jnp.sum(p, axis=-1, keepdims=True)
    alpha = p / jnp.where(denom > 0, denom, 1.0)
    out = alpha @ xw
    y = (out - mean) / jnp.sqrt(var + BN_EPS) * gamma + beta
    return jnp.where(y > 0, y, jnp.expm1(y)) if apply_elu else y


def _ref_decoder(h1, h2, h3, adj, p):
    h3_ = _ref_layer(h3, p['w3'], p['as3'], p['ad3'], adj, p['g3'], p['b3'], p['m3'], p['v3'], True)
    h2_ = _ref_layer(h3_ + h2, p['w2'], p['as2'], p['ad2'], adj, p['g2'], p['b2'], p['m2'], p['v2'], True)
    h1_ = _ref_layer(h2_ + h1, p['w1'], p['as1'], p['ad1'], adj, p['g1'], p['b1'], p['m1'], p['v1'], False)
    return h1_


# ----------------------------------------- main -----------------------------------------
if __name__ == "__main__":
    hidden_dims = [8, 16, 32, 64]     # [d0, d1, d2, d3]
    d0, d1, d2, d3 = hidden_dims
    N = 16                            # number of graph nodes

    ks = jax.random.split(jax.random.PRNGKey(0), 32)
    ki = iter(ks)

    def xavier(k, shape, gain=1.414):
        fan_in, fan_out = shape[0], shape[1]
        std = gain * jnp.sqrt(2.0 / (fan_in + fan_out))
        return std * jax.random.normal(k, shape, dtype=jnp.float32)

    def bn_params(c):
        g = 1.0 + 0.1 * jax.random.normal(next(ki), (1, c), dtype=jnp.float32)
        b = 0.1 * jax.random.normal(next(ki), (1, c), dtype=jnp.float32)
        m = 0.1 * jax.random.normal(next(ki), (1, c), dtype=jnp.float32)
        v = 1.0 + 0.1 * jax.random.uniform(next(ki), (1, c), dtype=jnp.float32)
        return g, b, m, v

    params = {}
    # conv3_: d3 -> d2   (lin_src: (in, out); att_src/att_dst: (1, heads=1, out) -> (1, out))
    params['w3'] = xavier(next(ki), (d3, d2))
    params['as3'] = xavier(next(ki), (1, d2))
    params['ad3'] = xavier(next(ki), (1, d2))
    params['g3'], params['b3'], params['m3'], params['v3'] = bn_params(d2)
    # conv2_: d2 -> d1
    params['w2'] = xavier(next(ki), (d2, d1))
    params['as2'] = xavier(next(ki), (1, d1))
    params['ad2'] = xavier(next(ki), (1, d1))
    params['g2'], params['b2'], params['m2'], params['v2'] = bn_params(d1)
    # conv1_: d1 -> d0
    params['w1'] = xavier(next(ki), (d1, d0))
    params['as1'] = xavier(next(ki), (1, d0))
    params['ad1'] = xavier(next(ki), (1, d0))
    params['g1'], params['b1'], params['m1'], params['v1'] = bn_params(d0)

    # Inputs: h3:(N,d3), h2:(N,d2), h1:(N,d1)  (shapes implied by the skip fusions).
    h3 = jax.random.normal(next(ki), (N, d3), dtype=jnp.float32)
    h2 = jax.random.normal(next(ki), (N, d2), dtype=jnp.float32)
    h1 = jax.random.normal(next(ki), (N, d1), dtype=jnp.float32)

    # Deterministic edge_index (2, E): ring + skip-3 edges, no self-loops.
    src = jnp.arange(N, dtype=jnp.int32)
    dst_a = (src + 1) % N
    dst_b = (src + 3) % N
    edge_index = jnp.stack([jnp.concatenate([src, src]),
                            jnp.concatenate([dst_a, dst_b])])        # (2, 32)
    # Dense adjacency mask: adj[dst, src] = 1.0 (exactly {0,1}; .set collapses multi-edges).
    adj = jnp.zeros((N, N), jnp.float32).at[edge_index[1], edge_index[0]].set(1.0)

    # Fold BN + attention vectors into augmented weights and pack all constants
    # into one (rows, 64) buffer -> a single constant DMA.
    wprm, layout = prepare_params(params, hidden_dims)

    out = gate_decoder_3layers(h1, h2, h3, adj, wprm, layout)
    out = jax.block_until_ready(out)

    ref = _ref_decoder(h1, h2, h3, adj, params)
    assert out.shape == (N, d0), out.shape
    assert jnp.allclose(out, ref, atol=1e-4, rtol=1e-4), float(jnp.max(jnp.abs(out - ref)))

    print("KERNEL_OK")
</pallas_src>

<mosaic_0001>
module attributes {stable_mosaic.version = 11 : i64} {
  func.func @_decoder_kernel(%arg0: memref<16x16xf32, #tpu.memory_space<vmem>>, %arg1: memref<16x32xf32, #tpu.memory_space<vmem>>, %arg2: memref<16x64xf32, #tpu.memory_space<vmem>>, %arg3: memref<16x16xf32, #tpu.memory_space<vmem>>, %arg4: memref<120x64xf32, #tpu.memory_space<vmem>>, %arg5: memref<16x8xf32, #tpu.memory_space<vmem>>) attributes {dimension_semantics = [], scalar_prefetch = 0 : i64, scratch_operands = 0 : i64, tpu.core_type = #tpu.core_type<tc>} {
    %c0 = arith.constant 0 : index
    %c0_0 = arith.constant 0 : index
    %0 = vector.load %arg3[%c0, %c0_0] : memref<16x16xf32, #tpu.memory_space<vmem>>, vector<16x16xf32>
    %c0_1 = arith.constant 0 : index
    %c0_2 = arith.constant 0 : index
    %1 = vector.load %arg2[%c0_1, %c0_2] : memref<16x64xf32, #tpu.memory_space<vmem>>, vector<16x64xf32>
    %c0_3 = arith.constant 0 : index
    %c0_4 = arith.constant 0 : index
    %2 = vector.load %arg4[%c0_3, %c0_4] : memref<120x64xf32, #tpu.memory_space<vmem>>, vector<64x33xf32>
    %c112 = arith.constant 112 : index
    %c0_5 = arith.constant 0 : index
    %3 = vector.load %arg4[%c112, %c0_5] : memref<120x64xf32, #tpu.memory_space<vmem>>, vector<1x64xf32>
    %c113 = arith.constant 113 : index
    %c0_6 = arith.constant 0 : index
    %4 = vector.load %arg4[%c113, %c0_6] : memref<120x64xf32, #tpu.memory_space<vmem>>, vector<1x32xf32>
    %cst = arith.constant dense<0.000000e+00> : vector<16x33xf32>
    %5 = tpu.matmul %1, %2, %cst {dimension_numbers = #tpu.dot_dimension_numbers<[1], [0], [0], [1], [0, 0, 1, 1], [], []>} : vector<16x64xf32>, vector<64x33xf32>, vector<16x33xf32> -> vector<16x33xf32>
    %6 = vector.extract_strided_slice %5 {offsets = [0, 0], sizes = [16, 32], strides = [1, 1]} : vector<16x33xf32> to vector<16x32xf32>
    %7 = vector.extract_strided_slice %5 {offsets = [0, 32], sizes = [16, 1], strides = [1, 1]} : vector<16x33xf32> to vector<16x1xf32>
    %cst_7 = arith.constant dense<0.000000e+00> : vector<1x16xf32>
    %8 = tpu.matmul %3, %1, %cst_7 {dimension_numbers = #tpu.dot_dimension_numbers<[1], [1], [0], [0], [0, 0, 1, 0], [], []>} : vector<1x64xf32>, vector<16x64xf32>, vector<1x16xf32> -> vector<1x16xf32>
    %9 = vector.broadcast %7 : vector<16x1xf32> to vector<16x16xf32>
    %10 = vector.broadcast %8 : vector<1x16xf32> to vector<16x16xf32>
    %11 = arith.addf %9, %10 : vector<16x16xf32>
    %12 = arith.negf %11 : vector<16x16xf32>
    %13 = math.exp %12 : vector<16x16xf32>
    %cst_8 = arith.constant 1.000000e+00 : f32
    %14 = vector.broadcast %cst_8 : f32 to vector<16x16xf32>
    %15 = arith.addf %14, %13 : vector<16x16xf32>
    %16 = arith.divf %14, %15 : vector<16x16xf32>
    %17 = math.exp %16 : vector<16x16xf32>
    %18 = arith.mulf %0, %17 : vector<16x16xf32>
    %cst_9 = arith.constant dense<0.000000e+00> : vector<16xf32>
    %19 = vector.multi_reduction <add>, %18, %cst_9 [1] : vector<16x16xf32> to vector<16xf32>
    %20 = vector.shape_cast %19 : vector<16xf32> to vector<16x1xf32>
    %cst_10 = arith.constant 0.000000e+00 : f32
    %21 = vector.broadcast %cst_10 : f32 to vector<16x1xf32>
    %22 = arith.cmpf ogt, %20, %21 : vector<16x1xf32>
    %cst_11 = arith.constant 1.000000e+00 : f32
    %23 = vector.broadcast %cst_11 : f32 to vector<16x1xf32>
    %24 = arith.select %22, %20, %23 : vector<16x1xi1>, vector<16x1xf32>
    %25 = tpu.reciprocal %24 {approx = true} : vector<16x1xf32> -> vector<16x1xf32>
    %26 = arith.mulf %24, %25 : vector<16x1xf32>
    %cst_12 = arith.constant 2.000000e+00 : f32
    %27 = vector.broadcast %cst_12 : f32 to vector<16x1xf32>
    %28 = arith.subf %27, %26 : vector<16x1xf32>
    %29 = arith.mulf %25, %28 : vector<16x1xf32>
    %cst_13 = arith.constant dense<0.000000e+00> : vector<16x32xf32>
    %30 = tpu.matmul %18, %6, %cst_13 {dimension_numbers = #tpu.dot_dimension_numbers<[1], [0], [0], [1], [0, 0, 1, 1], [], []>} : vector<16x16xf32>, vector<16x32xf32>, vector<16x32xf32> -> vector<16x32xf32>
    %31 = vector.broadcast %29 : vector<16x1xf32> to vector<16x32xf32>
    %32 = arith.mulf %30, %31 : vector<16x32xf32>
    %33 = vector.broadcast %4 : vector<1x32xf32> to vector<16x32xf32>
    %34 = arith.addf %32, %33 : vector<16x32xf32>
    %cst_14 = arith.constant 0.000000e+00 : f32
    %35 = vector.broadcast %cst_14 : f32 to vector<16x32xf32>
    %36 = arith.cmpf ogt, %34, %35 : vector<16x32xf32>
    %37 = math.exp %34 : vector<16x32xf32>
    %cst_15 = arith.constant 1.000000e+00 : f32
    %38 = vector.broadcast %cst_15 : f32 to vector<16x32xf32>
    %39 = arith.subf %37, %38 : vector<16x32xf32>
    %40 = arith.select %36, %34, %39 : vector<16x32xi1>, vector<16x32xf32>
    %c0_16 = arith.constant 0 : index
    %c0_17 = arith.constant 0 : index
    %41 = vector.load %arg1[%c0_16, %c0_17] : memref<16x32xf32, #tpu.memory_space<vmem>>, vector<16x32xf32>
    %42 = arith.addf %40, %41 : vector<16x32xf32>
    %c64 = arith.constant 64 : index
    %c0_18 = arith.constant 0 : index
    %43 = vector.load %arg4[%c64, %c0_18] : memref<120x64xf32, #tpu.memory_space<vmem>>, vector<32x17xf32>
    %c114 = arith.constant 114 : index
    %c0_19 = arith.constant 0 : index
    %44 = vector.load %arg4[%c114, %c0_19] : memref<120x64xf32, #tpu.memory_space<vmem>>, vector<1x32xf32>
    %c115 = arith.constant 115 : index
    %c0_20 = arith.constant 0 : index
    %45 = vector.load %arg4[%c115, %c0_20] : memref<120x64xf32, #tpu.memory_space<vmem>>, vector<1x16xf32>
    %cst_21 = arith.constant dense<0.000000e+00> : vector<16x17xf32>
    %46 = tpu.matmul %42, %43, %cst_21 {dimension_numbers = #tpu.dot_dimension_numbers<[1], [0], [0], [1], [0, 0, 1, 1], [], []>} : vector<16x32xf32>, vector<32x17xf32>, vector<16x17xf32> -> vector<16x17xf32>
    %47 = vector.extract_strided_slice %46 {offsets = [0, 0], sizes = [16, 16], strides = [1, 1]} : vector<16x17xf32> to vector<16x16xf32>
    %48 = vector.extract_strided_slice %46 {offsets = [0, 16], sizes = [16, 1], strides = [1, 1]} : vector<16x17xf32> to vector<16x1xf32>
    %cst_22 = arith.constant dense<0.000000e+00> : vector<1x16xf32>
    %49 = tpu.matmul %44, %42, %cst_22 {dimension_numbers = #tpu.dot_dimension_numbers<[1], [1], [0], [0], [0, 0, 1, 0], [], []>} : vector<1x32xf32>, vector<16x32xf32>, vector<1x16xf32> -> vector<1x16xf32>
    %50 = vector.broadcast %48 : vector<16x1xf32> to vector<16x16xf32>
    %51 = vector.broadcast %49 : vector<1x16xf32> to vector<16x16xf32>
    %52 = arith.addf %50, %51 : vector<16x16xf32>
    %53 = arith.negf %52 : vector<16x16xf32>
    %54 = math.exp %53 : vector<16x16xf32>
    %cst_23 = arith.constant 1.000000e+00 : f32
    %55 = vector.broadcast %cst_23 : f32 to vector<16x16xf32>
    %56 = arith.addf %55, %54 : vector<16x16xf32>
    %57 = arith.divf %55, %56 : vector<16x16xf32>
    %58 = math.exp %57 : vector<16x16xf32>
    %59 = arith.mulf %0, %58 : vector<16x16xf32>
    %cst_24 = arith.constant dense<0.000000e+00> : vector<16xf32>
    %60 = vector.multi_reduction <add>, %59, %cst_24 [1] : vector<16x16xf32> to vector<16xf32>
    %61 = vector.shape_cast %60 : vector<16xf32> to vector<16x1xf32>
    %cst_25 = arith.constant 0.000000e+00 : f32
    %62 = vector.broadcast %cst_25 : f32 to vector<16x1xf32>
    %63 = arith.cmpf ogt, %61, %62 : vector<16x1xf32>
    %cst_26 = arith.constant 1.000000e+00 : f32
    %64 = vector.broadcast %cst_26 : f32 to vector<16x1xf32>
    %65 = arith.select %63, %61, %64 : vector<16x1xi1>, vector<16x1xf32>
    %66 = tpu.reciprocal %65 {approx = true} : vector<16x1xf32> -> vector<16x1xf32>
    %67 = arith.mulf %65, %66 : vector<16x1xf32>
    %cst_27 = arith.constant 2.000000e+00 : f32
    %68 = vector.broadcast %cst_27 : f32 to vector<16x1xf32>
    %69 = arith.subf %68, %67 : vector<16x1xf32>
    %70 = arith.mulf %66, %69 : vector<16x1xf32>
    %cst_28 = arith.constant dense<0.000000e+00> : vector<16x16xf32>
    %71 = tpu.matmul %59, %47, %cst_28 {dimension_numbers = #tpu.dot_dimension_numbers<[1], [0], [0], [1], [0, 0, 1, 1], [], []>} : vector<16x16xf32>, vector<16x16xf32>, vector<16x16xf32> -> vector<16x16xf32>
    %72 = vector.broadcast %70 : vector<16x1xf32> to vector<16x16xf32>
    %73 = arith.mulf %71, %72 : vector<16x16xf32>
    %74 = vector.broadcast %45 : vector<1x16xf32> to vector<16x16xf32>
    %75 = arith.addf %73, %74 : vector<16x16xf32>
    %cst_29 = arith.constant 0.000000e+00 : f32
    %76 = vector.broadcast %cst_29 : f32 to vector<16x16xf32>
    %77 = arith.cmpf ogt, %75, %76 : vector<16x16xf32>
    %78 = math.exp %75 : vector<16x16xf32>
    %cst_30 = arith.constant 1.000000e+00 : f32
    %79 = vector.broadcast %cst_30 : f32 to vector<16x16xf32>
    %80 = arith.subf %78, %79 : vector<16x16xf32>
    %81 = arith.select %77, %75, %80 : vector<16x16xi1>, vector<16x16xf32>
    %c0_31 = arith.constant 0 : index
    %c0_32 = arith.constant 0 : index
    %82 = vector.load %arg0[%c0_31, %c0_32] : memref<16x16xf32, #tpu.memory_space<vmem>>, vector<16x16xf32>
    %83 = arith.addf %81, %82 : vector<16x16xf32>
    %c96 = arith.constant 96 : index
    %c0_33 = arith.constant 0 : index
    %84 = vector.load %arg4[%c96, %c0_33] : memref<120x64xf32, #tpu.memory_space<vmem>>, vector<16x9xf32>
    %c116 = arith.constant 116 : index
    %c0_34 = arith.constant 0 : index
    %85 = vector.load %arg4[%c116, %c0_34] : memref<120x64xf32, #tpu.memory_space<vmem>>, vector<1x16xf32>
    %c117 = arith.constant 117 : index
    %c0_35 = arith.constant 0 : index
    %86 = vector.load %arg4[%c117, %c0_35] : memref<120x64xf32, #tpu.memory_space<vmem>>, vector<1x8xf32>
    %cst_36 = arith.constant dense<0.000000e+00> : vector<16x9xf32>
    %87 = tpu.matmul %83, %84, %cst_36 {dimension_numbers = #tpu.dot_dimension_numbers<[1], [0], [0], [1], [0, 0, 1, 1], [], []>} : vector<16x16xf32>, vector<16x9xf32>, vector<16x9xf32> -> vector<16x9xf32>
    %88 = vector.extract_strided_slice %87 {offsets = [0, 0], sizes = [16, 8], strides = [1, 1]} : vector<16x9xf32> to vector<16x8xf32>
    %89 = vector.extract_strided_slice %87 {offsets = [0, 8], sizes = [16, 1], strides = [1, 1]} : vector<16x9xf32> to vector<16x1xf32>
    %cst_37 = arith.constant dense<0.000000e+00> : vector<1x16xf32>
    %90 = tpu.matmul %85, %83, %cst_37 {dimension_numbers = #tpu.dot_dimension_numbers<[1], [1], [0], [0], [0, 0, 1, 0], [], []>} : vector<1x16xf32>, vector<16x16xf32>, vector<1x16xf32> -> vector<1x16xf32>
    %91 = vector.broadcast %89 : vector<16x1xf32> to vector<16x16xf32>
    %92 = vector.broadcast %90 : vector<1x16xf32> to vector<16x16xf32>
    %93 = arith.addf %91, %92 : vector<16x16xf32>
    %94 = arith.negf %93 : vector<16x16xf32>
    %95 = math.exp %94 : vector<16x16xf32>
    %cst_38 = arith.constant 1.000000e+00 : f32
    %96 = vector.broadcast %cst_38 : f32 to vector<16x16xf32>
    %97 = arith.addf %96, %95 : vector<16x16xf32>
    %98 = arith.divf %96, %97 : vector<16x16xf32>
    %99 = math.exp %98 : vector<16x16xf32>
    %100 = arith.mulf %0, %99 : vector<16x16xf32>
    %cst_39 = arith.constant dense<0.000000e+00> : vector<16xf32>
    %101 = vector.multi_reduction <add>, %100, %cst_39 [1] : vector<16x16xf32> to vector<16xf32>
    %102 = vector.shape_cast %101 : vector<16xf32> to vector<16x1xf32>
    %cst_40 = arith.constant 0.000000e+00 : f32
    %103 = vector.broadcast %cst_40 : f32 to vector<16x1xf32>
    %104 = arith.cmpf ogt, %102, %103 : vector<16x1xf32>
    %cst_41 = arith.constant 1.000000e+00 : f32
    %105 = vector.broadcast %cst_41 : f32 to vector<16x1xf32>
    %106 = arith.select %104, %102, %105 : vector<16x1xi1>, vector<16x1xf32>
    %107 = tpu.reciprocal %106 {approx = true} : vector<16x1xf32> -> vector<16x1xf32>
    %108 = arith.mulf %106, %107 : vector<16x1xf32>
    %cst_42 = arith.constant 2.000000e+00 : f32
    %109 = vector.broadcast %cst_42 : f32 to vector<16x1xf32>
    %110 = arith.subf %109, %108 : vector<16x1xf32>
    %111 = arith.mulf %107, %110 : vector<16x1xf32>
    %cst_43 = arith.constant dense<0.000000e+00> : vector<16x8xf32>
    %112 = tpu.matmul %100, %88, %cst_43 {dimension_numbers = #tpu.dot_dimension_numbers<[1], [0], [0], [1], [0, 0, 1, 1], [], []>} : vector<16x16xf32>, vector<16x8xf32>, vector<16x8xf32> -> vector<16x8xf32>
    %113 = vector.broadcast %111 : vector<16x1xf32> to vector<16x8xf32>
    %114 = arith.mulf %112, %113 : vector<16x8xf32>
    %115 = vector.broadcast %86 : vector<1x8xf32> to vector<16x8xf32>
    %116 = arith.addf %114, %115 : vector<16x8xf32>
    %c0_44 = arith.constant 0 : index
    %c0_45 = arith.constant 0 : index
    %117 = vector.load %arg5[%c0_44, %c0_45] : memref<16x8xf32, #tpu.memory_space<vmem>>, vector<16x8xf32>
    tpu.vector_store %arg5[%c0_44, %c0_45], %116 {strides = array<i32>} : memref<16x8xf32, #tpu.memory_space<vmem>>, vector<16x8xf32>,
    return
  }
}

</mosaic_0001>

<llo_original>
// kernel: tpu_custom_call.1
$region0: #{tpu_custom_call.1}
  #allocation0 [shape = 'u32[]', space=smem, size = 0x4, offset = 0x4, fixed_abs, tag = 'smem constant byte address 0x4 - core index']
  #allocation1 [shape = 'u32[144,128]{1,0:T(1,128)}', space=vmem, size = 0x12000, scoped, tag = 'internal scratch']
  %s0 = inlined_call_operand.vmem [shape: f32[16,16], index: 0, kind: input, shape index: {}]
  %s1 = inlined_call_operand.vmem [shape: f32[16,32], index: 1, kind: input, shape index: {}]
  %s2 = inlined_call_operand.vmem [shape: f32[16,64], index: 2, kind: input, shape index: {}]
  %s3 = inlined_call_operand.vmem [shape: f32[16,16], index: 3, kind: input, shape index: {}]
  %s4 = inlined_call_operand.vmem [shape: f32[120,64], index: 4, kind: input, shape index: {}]
  %s5 = inlined_call_operand.vmem [shape: f32[16,8], index: 5, kind: output, shape index: {}]
  %s6 = sld [smem:[#allocation0]]
  $region30: #{tpu_custom_call.1} parent=0
    _
  %s8 = ssub.s32 1, %s6
  %s9 = scalar_select 0, %s8, %s6
  // Predicated region
  $region2: #{tpu_custom_call.1} parent=0 // pred_check
    _
  $region3: #{tpu_custom_call.1} parent=0 // pred_check_branch
    %11 = sbr.rel (0) target = $region5
  $region4: #{tpu_custom_call.1} parent=0 // pred_region
    _
  $region5: #{tpu_custom_call.1} parent=0 // pred_fallthru
    _
  // Predicated region
  $region6: #{tpu_custom_call.1} parent=0 // pred_check
    _
  $region7: #{tpu_custom_call.1} parent=0 // pred_check_branch
    %13 = sbr.rel (0) target = $region9
  $region8: #{tpu_custom_call.1} parent=0 // pred_region
    _
  $region9: #{tpu_custom_call.1} parent=0 // pred_fallthru
    _
  // Predicated region
  $region10: #{tpu_custom_call.1} parent=0 // pred_check
    _
  $region11: #{tpu_custom_call.1} parent=0 // pred_check_branch
    %15 = sbr.rel (0) target = $region13
  $region12: #{tpu_custom_call.1} parent=0 // pred_region
    _
  $region13: #{tpu_custom_call.1} parent=0 // pred_fallthru
    _
  // Predicated region
  $region14: #{tpu_custom_call.1} parent=0 // pred_check
    _
  $region15: #{tpu_custom_call.1} parent=0 // pred_check_branch
    %17 = sbr.rel (0) target = $region17
  $region16: #{tpu_custom_call.1} parent=0 // pred_region
    _
  $region17: #{tpu_custom_call.1} parent=0 // pred_fallthru
    _
  // Predicated region
  $region18: #{tpu_custom_call.1} parent=0 // pred_check
    _
  $region19: #{tpu_custom_call.1} parent=0 // pred_check_branch
    %19 = sbr.rel (0) target = $region21
  $region20: #{tpu_custom_call.1} parent=0 // pred_region
    _
  $region21: #{tpu_custom_call.1} parent=0 // pred_fallthru
    _
  %v20 = vld [vmem:[%s3] sm:$0xff]
  %v21 = vld [vmem:[%s3 + $0x8] sm:$0xff]
  %v22 = vld [vmem:[%s2] sm:$0xff]
  %v23 = vld [vmem:[%s2 + $0x8] sm:$0xff]
  %v24 = vld [vmem:[%s4] sm:$0xff]
  %v25 = vld [vmem:[%s4 + $0x8] sm:$0xff]
  %v26 = vld [vmem:[%s4 + $0x10] sm:$0xff]
  %v27 = vld [vmem:[%s4 + $0x18] sm:$0xff]
  %v28 = vld [vmem:[%s4 + $0x20] sm:$0xff]
  %v29 = vld [vmem:[%s4 + $0x28] sm:$0xff]
  %v30 = vld [vmem:[%s4 + $0x30] sm:$0xff]
  %v31 = vld [vmem:[%s4 + $0x38] sm:$0xff]
  %v32 = vld [vmem:[%s4 + $0x70] sm:$0x1]
  %v33 = vld [vmem:[%s4 + $0x71] sm:$0x1]
  %vm34 = vcmask 523264
  %v36 = vsel %vm34, %v22, 0
  %v39 = vsel %vm34, %v23, 0
  %41 = vmatprep.subr.mxu0 0.0
  %42 = vmatpush1.msra.mxu0 0.0
  %43 = vmatprep.subr.mxu0 0.0
  %44 = vmatpush1.msra.mxu0 0.0
  %45 = vmatprep.subr.mxu0 0.0
  %46 = vmatpush1.msra.mxu0 0.0
  %47 = vmatprep.subr.mxu0 0.0
  %48 = vmatpush1.msra.mxu0 0.0
  %49 = vmatprep.subr.mxu0 0.0
  %50 = vmatpush1.msra.mxu0 0.0
  %51 = vmatprep.subr.mxu0 0.0
  %52 = vmatpush1.msra.mxu0 0.0
  %53 = vmatprep.subr.mxu0 0.0
  %54 = vmatpush1.msra.mxu0 0.0
  %55 = vmatprep.subr.mxu0 0.0
  %56 = vmatpush1.msra.mxu0 0.0
  %57 = vmatprep.subr.mxu0 0.0
  %58 = vmatpush1.msra.mxu0 %v31
  %59 = vmatprep.subr.mxu0 0.0
  %60 = vmatpush1.msra.mxu0 %v30
  %61 = vmatprep.subr.mxu0 0.0
  %62 = vmatpush1.msra.mxu0 %v29
  %63 = vmatprep.subr.mxu0 0.0
  %64 = vmatpush1.msra.mxu0 %v28
  %65 = vmatprep.subr.mxu0 0.0
  %66 = vmatpush1.msra.mxu0 %v27
  %67 = vmatprep.subr.mxu0 0.0
  %68 = vmatpush1.msra.mxu0 %v26
  %69 = vmatprep.subr.mxu0 0.0
  %70 = vmatpush1.msra.mxu0 %v25
  %71 = vmatprep.subr.mxu0 0.0
  %72 = vmatpush1.msra.mxu0 %v24
  %73 = vmatprep.subr.mxu0 0.0
  %74 = vmatpush2.msra.mxu0 0.0
  %75 = vmatprep.subr.mxu0 0.0
  %76 = vmatpush2.msra.mxu0 0.0
  %77 = vmatprep.subr.mxu0 0.0
  %78 = vmatpush2.msra.mxu0 0.0
  %79 = vmatprep.subr.mxu0 0.0
  %80 = vmatpush2.msra.mxu0 0.0
  %81 = vmatprep.subr.mxu0 0.0
  %82 = vmatpush2.msra.mxu0 0.0
  %83 = vmatprep.subr.mxu0 0.0
  %84 = vmatpush2.msra.mxu0 0.0
  %85 = vmatprep.subr.mxu0 0.0
  %86 = vmatpush2.msra.mxu0 0.0
  %87 = vmatprep.subr.mxu0 0.0
  %88 = vmatpush2.msra.mxu0 0.0
  %89 = vmatprep.subr.mxu0 0.0
  %90 = vmatpush2.msra.mxu0 0.0
  %91 = vmatprep.subr.mxu0 0.0
  %92 = vmatpush2.msra.mxu0 0.0
  %93 = vmatprep.subr.mxu0 0.0
  %94 = vmatpush2.msra.mxu0 0.0
  %95 = vmatprep.subr.mxu0 0.0
  %96 = vmatpush2.msra.mxu0 0.0
  %97 = vmatprep.subr.mxu0 0.0
  %98 = vmatpush2.msra.mxu0 0.0
  %99 = vmatprep.subr.mxu0 0.0
  %100 = vmatpush2.msra.mxu0 0.0
  %101 = vmatprep.subr.mxu0 0.0
  %102 = vmatpush2.msra.mxu0 0.0
  %103 = vmatprep.subr.mxu0 0.0
  %104 = vmatpush2.msra.mxu0 0.0
  %105 = vmatprep.mubr.f32.mxu0 0.0
  %106 = vmatmul.mubr.f32.gmra.mxu0 %v36
  %v107 = vpop.f32.mrf.mxu0
  %v108 = vadd.f32 0.0, %v107
  %v109 = vpop.f32.mrf.mxu0
  %110 = vmatprep.mubr.f32.mxu0 0.0
  %111 = vmatmul.mubr.f32.gmra.mxu0 %v39
  %v112 = vpop.f32.mrf.mxu0
  %v113 = vadd.f32 0.0, %v112
  %v114 = vpop.f32.mrf.mxu0
  %115 = vdwg.mxu0
  %v117 = vsel %vm34, %v32, 0
  %119 = vmatprep.subr.mxu0 0.0
  %120 = vmatpush1.xpose.msra.mxu0 0.0
  %121 = vmatprep.subr.mxu0 0.0
  %122 = vmatpush1.xpose.msra.mxu0 0.0
  %123 = vmatprep.subr.mxu0 0.0
  %124 = vmatpush1.xpose.msra.mxu0 0.0
  %125 = vmatprep.subr.mxu0 0.0
  %126 = vmatpush1.xpose.msra.mxu0 0.0
  %127 = vmatprep.subr.mxu0 0.0
  %128 = vmatpush1.xpose.msra.mxu0 0.0
  %129 = vmatprep.subr.mxu0 0.0
  %130 = vmatpush1.xpose.msra.mxu0 0.0
  %131 = vmatprep.subr.mxu0 0.0
  %132 = vmatpush1.xpose.msra.mxu0 0.0
  %133 = vmatprep.subr.mxu0 0.0
  %134 = vmatpush1.xpose.msra.mxu0 0.0
  %135 = vmatprep.subr.mxu0 0.0
  %136 = vmatpush1.xpose.msra.mxu0 0.0
  %137 = vmatprep.subr.mxu0 0.0
  %138 = vmatpush1.xpose.msra.mxu0 0.0
  %139 = vmatprep.subr.mxu0 0.0
  %140 = vmatpush1.xpose.msra.mxu0 0.0
  %141 = vmatprep.subr.mxu0 0.0
  %142 = vmatpush1.xpose.msra.mxu0 0.0
  %143 = vmatprep.subr.mxu0 0.0
  %144 = vmatpush1.xpose.msra.mxu0 0.0
  %145 = vmatprep.subr.mxu0 0.0
  %146 = vmatpush1.xpose.msra.mxu0 0.0
  %147 = vmatprep.subr.mxu0 0.0
  %148 = vmatpush1.xpose.msra.mxu0 %v39
  %149 = vmatprep.subr.mxu0 0.0
  %150 = vmatpush1.xpose.msra.mxu0 %v36
  %151 = vmatprep.subr.mxu0 0.0
  %152 = vmatpush2.xpose.msra.mxu0 0.0
  %153 = vmatprep.subr.mxu0 0.0
  %154 = vmatpush2.xpose.msra.mxu0 0.0
  %155 = vmatprep.subr.mxu0 0.0
  %156 = vmatpush2.xpose.msra.mxu0 0.0
  %157 = vmatprep.subr.mxu0 0.0
  %158 = vmatpush2.xpose.msra.mxu0 0.0
  %159 = vmatprep.subr.mxu0 0.0
  %160 = vmatpush2.xpose.msra.mxu0 0.0
  %161 = vmatprep.subr.mxu0 0.0
  %162 = vmatpush2.xpose.msra.mxu0 0.0
  %163 = vmatprep.subr.mxu0 0.0
  %164 = vmatpush2.xpose.msra.mxu0 0.0
  %165 = vmatprep.subr.mxu0 0.0
  %166 = vmatpush2.xpose.msra.mxu0 0.0
  %167 = vmatprep.subr.mxu0 0.0
  %168 = vmatpush2.xpose.msra.mxu0 0.0
  %169 = vmatprep.subr.mxu0 0.0
  %170 = vmatpush2.xpose.msra.mxu0 0.0
  %171 = vmatprep.subr.mxu0 0.0
  %172 = vmatpush2.xpose.msra.mxu0 0.0
  %173 = vmatprep.subr.mxu0 0.0
  %174 = vmatpush2.xpose.msra.mxu0 0.0
  %175 = vmatprep.subr.mxu0 0.0
  %176 = vmatpush2.xpose.msra.mxu0 0.0
  %177 = vmatprep.subr.mxu0 0.0
  %178 = vmatpush2.xpose.msra.mxu0 0.0
  %179 = vmatprep.subr.mxu0 0.0
  %180 = vmatpush2.xpose.msra.mxu0 0.0
  %181 = vmatprep.subr.mxu0 0.0
  %182 = vmatpush2.xpose.msra.mxu0 0.0
  %183 = vmatprep.mubr.f32.mxu0 0.0
  %184 = vmatmul.mubr.f32.gmra.mxu0 %v117
  %v185 = vpop.f32.mrf.mxu0
  %v186 = vadd.f32 0.0, %v185
  %v187 = vpop.f32.mrf.mxu0
  %188 = vdwg.mxu0
  %190 = vset.pattern.permute.xlu0 32
  %191 = vperm.xlu0 %190, %v108
  %v192 = vpop.permute.xlu0 %191
  %195 = vset.pattern.permute.xlu0 32
  %196 = vperm.xlu0 %195, %v113
  %v197 = vpop.permute.xlu0 %196
  %v199 = vlaneseq
  %v200 = vshrl.u32 %v199, 7
  %v201 = vsub.s32 0, %v200
  %v202 = vrot.slane %v186, %v201
  %v203 = vadd.f32 %v192, %v202
  %v204 = vadd.f32 %v197, %v202
  %v205 = vxor.u32 %v203, 2147483648
  %v206 = vxor.u32 %v204, 2147483648
  %v207 = vmul.f32 %v205, 1.442695
  %v208 = vpow.pop %v207
  %v209 = vmul.f32 %v206, 1.442695
  %v210 = vpow.pop %v209
  %v211 = vadd.f32 %v208, 1.0
  %v212 = vadd.f32 %v210, 1.0
  %v213 = vrcp.pop %v211
  %v214 = vmul.f32 1.0, %v213
  %v215 = vrcp.pop %v212
  %v216 = vmul.f32 1.0, %v215
  %v217 = vmul.f32 %v214, 1.442695
  %v218 = vpow.pop %v217
  %v219 = vmul.f32 %v216, 1.442695
  %v220 = vpow.pop %v219
  %v221 = vmul.f32 %v20, %v218
  %v222 = vmul.f32 %v21, %v220
  %vm223 = vcmask 130048
  %v224 = vsel %vm223, %v221, 0.0
  %225 = vadd.xlane.f32.xlu0 %v224
  %v226 = vpop.xlane.xlu0 %225
  %v227 = vsel %vm223, %v222, 0.0
  %228 = vadd.xlane.f32.xlu0 %v227
  %v229 = vpop.xlane.xlu0 %228
  %vm230 = vcmp.gt.f32.partialorder %v226, 0.0
  %vm231 = vcmp.gt.f32.partialorder %v229, 0.0
  %v232 = vsel %vm230, %v226, 1.0
  %v233 = vsel %vm231, %v229, 1.0
  %v234 = vrcp.pop %v232
  %v235 = vrcp.pop %v233
  %v236 = vmul.f32 %v232, %v234
  %v237 = vmul.f32 %v233, %v235
  %v238 = vsub.f32 2.0, %v236
  %v239 = vsub.f32 2.0, %v237
  %v240 = vmul.f32 %v234, %v238
  %v241 = vmul.f32 %v235, %v239
  %v243 = vsel %vm223, %v221, 0
  %v246 = vsel %vm223, %v222, 0
  %248 = vmatprep.subr.mxu0 0.0
  %249 = vmatpush1.msra.mxu0 0.0
  %250 = vmatprep.subr.mxu0 0.0
  %251 = vmatpush1.msra.mxu0 0.0
  %252 = vmatprep.subr.mxu0 0.0
  %253 = vmatpush1.msra.mxu0 0.0
  %254 = vmatprep.subr.mxu0 0.0
  %255 = vmatpush1.msra.mxu0 0.0
  %256 = vmatprep.subr.mxu0 0.0
  %257 = vmatpush1.msra.mxu0 0.0
  %258 = vmatprep.subr.mxu0 0.0
  %259 = vmatpush1.msra.mxu0 0.0
  %260 = vmatprep.subr.mxu0 0.0
  %261 = vmatpush1.msra.mxu0 0.0
  %262 = vmatprep.subr.mxu0 0.0
  %263 = vmatpush1.msra.mxu0 0.0
  %264 = vmatprep.subr.mxu0 0.0
  %265 = vmatpush1.msra.mxu0 0.0
  %266 = vmatprep.subr.mxu0 0.0
  %267 = vmatpush1.msra.mxu0 0.0
  %268 = vmatprep.subr.mxu0 0.0
  %269 = vmatpush1.msra.mxu0 0.0
  %270 = vmatprep.subr.mxu0 0.0
  %271 = vmatpush1.msra.mxu0 0.0
  %272 = vmatprep.subr.mxu0 0.0
  %273 = vmatpush1.msra.mxu0 0.0
  %274 = vmatprep.subr.mxu0 0.0
  %275 = vmatpush1.msra.mxu0 0.0
  %276 = vmatprep.subr.mxu0 0.0
  %277 = vmatpush1.msra.mxu0 %v113
  %278 = vmatprep.subr.mxu0 0.0
  %279 = vmatpush1.msra.mxu0 %v108
  %280 = vmatprep.subr.mxu0 0.0
  %281 = vmatpush2.msra.mxu0 0.0
  %282 = vmatprep.subr.mxu0 0.0
  %283 = vmatpush2.msra.mxu0 0.0
  %284 = vmatprep.subr.mxu0 0.0
  %285 = vmatpush2.msra.mxu0 0.0
  %286 = vmatprep.subr.mxu0 0.0
  %287 = vmatpush2.msra.mxu0 0.0
  %288 = vmatprep.subr.mxu0 0.0
  %289 = vmatpush2.msra.mxu0 0.0
  %290 = vmatprep.subr.mxu0 0.0
  %291 = vmatpush2.msra.mxu0 0.0
  %292 = vmatprep.subr.mxu0 0.0
  %293 = vmatpush2.msra.mxu0 0.0
  %294 = vmatprep.subr.mxu0 0.0
  %295 = vmatpush2.msra.mxu0 0.0
  %296 = vmatprep.subr.mxu0 0.0
  %297 = vmatpush2.msra.mxu0 0.0
  %298 = vmatprep.subr.mxu0 0.0
  %299 = vmatpush2.msra.mxu0 0.0
  %300 = vmatprep.subr.mxu0 0.0
  %301 = vmatpush2.msra.mxu0 0.0
  %302 = vmatprep.subr.mxu0 0.0
  %303 = vmatpush2.msra.mxu0 0.0
  %304 = vmatprep.subr.mxu0 0.0
  %305 = vmatpush2.msra.mxu0 0.0
  %306 = vmatprep.subr.mxu0 0.0
  %307 = vmatpush2.msra.mxu0 0.0
  %308 = vmatprep.subr.mxu0 0.0
  %309 = vmatpush2.msra.mxu0 0.0
  %310 = vmatprep.subr.mxu0 0.0
  %311 = vmatpush2.msra.mxu0 0.0
  %312 = vmatprep.mubr.f32.mxu0 0.0
  %313 = vmatmul.mubr.f32.gmra.mxu0 %v243
  %v314 = vpop.f32.mrf.mxu0
  %v315 = vadd.f32 0.0, %v314
  %v316 = vpop.f32.mrf.mxu0
  %317 = vmatprep.mubr.f32.mxu0 0.0
  %318 = vmatmul.mubr.f32.gmra.mxu0 %v246
  %v319 = vpop.f32.mrf.mxu0
  %v320 = vadd.f32 0.0, %v319
  %v321 = vpop.f32.mrf.mxu0
  %322 = vdwg.mxu0
  %v323 = vmul.f32 %v315, %v240
  %v324 = vmul.f32 %v320, %v241
  %v325 = vlaneseq
  %v326 = vshrl.u32 %v325, 7
  %v327 = vsub.s32 0, %v326
  %v328 = vrot.slane %v33, %v327
  %v329 = vadd.f32 %v323, %v328
  %v330 = vadd.f32 %v324, %v328
  %vm331 = vcmp.gt.f32.partialorder %v329, 0.0
  %vm332 = vcmp.gt.f32.partialorder %v330, 0.0
  %v333 = vmul.f32 %v329, 1.442695
  %v334 = vpow.pop %v333
  %v335 = vmul.f32 %v330, 1.442695
  %v336 = vpow.pop %v335
  %v337 = vsub.f32 %v334, 1.0
  %v338 = vsub.f32 %v336, 1.0
  %v339 = vsel %vm331, %v329, %v337
  %v340 = vsel %vm332, %v330, %v338
  %v341 = vld [vmem:[%s1] sm:$0xff]
  %v342 = vld [vmem:[%s1 + $0x8] sm:$0xff]
  %v343 = vadd.f32 %v339, %v341
  %v344 = vadd.f32 %v340, %v342
  %v345 = vld [vmem:[%s4 + $0x40] sm:$0xff]
  %v346 = vld [vmem:[%s4 + $0x48] sm:$0xff]
  %v347 = vld [vmem:[%s4 + $0x50] sm:$0xff]
  %v348 = vld [vmem:[%s4 + $0x58] sm:$0xff]
  %v349 = vld [vmem:[%s4 + $0x72] sm:$0x1]
  %v350 = vld [vmem:[%s4 + $0x73] sm:$0x1]
  %vm351 = vcmask 261120
  %v353 = vsel %vm351, %v343, 0
  %v356 = vsel %vm351, %v344, 0
  %358 = vmatprep.subr.mxu0 0.0
  %359 = vmatpush1.msra.mxu0 0.0
  %360 = vmatprep.subr.mxu0 0.0
  %361 = vmatpush1.msra.mxu0 0.0
  %362 = vmatprep.subr.mxu0 0.0
  %363 = vmatpush1.msra.mxu0 0.0
  %364 = vmatprep.subr.mxu0 0.0
  %365 = vmatpush1.msra.mxu0 0.0
  %366 = vmatprep.subr.mxu0 0.0
  %367 = vmatpush1.msra.mxu0 0.0
  %368 = vmatprep.subr.mxu0 0.0
  %369 = vmatpush1.msra.mxu0 0.0
  %370 = vmatprep.subr.mxu0 0.0
  %371 = vmatpush1.msra.mxu0 0.0
  %372 = vmatprep.subr.mxu0 0.0
  %373 = vmatpush1.msra.mxu0 0.0
  %374 = vmatprep.subr.mxu0 0.0
  %375 = vmatpush1.msra.mxu0 0.0
  %376 = vmatprep.subr.mxu0 0.0
  %377 = vmatpush1.msra.mxu0 0.0
  %378 = vmatprep.subr.mxu0 0.0
  %379 = vmatpush1.msra.mxu0 0.0
  %380 = vmatprep.subr.mxu0 0.0
  %381 = vmatpush1.msra.mxu0 0.0
  %382 = vmatprep.subr.mxu0 0.0
  %383 = vmatpush1.msra.mxu0 %v348
  %384 = vmatprep.subr.mxu0 0.0
  %385 = vmatpush1.msra.mxu0 %v347
  %386 = vmatprep.subr.mxu0 0.0
  %387 = vmatpush1.msra.mxu0 %v346
  %388 = vmatprep.subr.mxu0 0.0
  %389 = vmatpush1.msra.mxu0 %v345
  %390 = vmatprep.subr.mxu0 0.0
  %391 = vmatpush2.msra.mxu0 0.0
  %392 = vmatprep.subr.mxu0 0.0
  %393 = vmatpush2.msra.mxu0 0.0
  %394 = vmatprep.subr.mxu0 0.0
  %395 = vmatpush2.msra.mxu0 0.0
  %396 = vmatprep.subr.mxu0 0.0
  %397 = vmatpush2.msra.mxu0 0.0
  %398 = vmatprep.subr.mxu0 0.0
  %399 = vmatpush2.msra.mxu0 0.0
  %400 = vmatprep.subr.mxu0 0.0
  %401 = vmatpush2.msra.mxu0 0.0
  %402 = vmatprep.subr.mxu0 0.0
  %403 = vmatpush2.msra.mxu0 0.0
  %404 = vmatprep.subr.mxu0 0.0
  %405 = vmatpush2.msra.mxu0 0.0
  %406 = vmatprep.subr.mxu0 0.0
  %407 = vmatpush2.msra.mxu0 0.0
  %408 = vmatprep.subr.mxu0 0.0
  %409 = vmatpush2.msra.mxu0 0.0
  %410 = vmatprep.subr.mxu0 0.0
  %411 = vmatpush2.msra.mxu0 0.0
  %412 = vmatprep.subr.mxu0 0.0
  %413 = vmatpush2.msra.mxu0 0.0
  %414 = vmatprep.subr.mxu0 0.0
  %415 = vmatpush2.msra.mxu0 0.0
  %416 = vmatprep.subr.mxu0 0.0
  %417 = vmatpush2.msra.mxu0 0.0
  %418 = vmatprep.subr.mxu0 0.0
  %419 = vmatpush2.msra.mxu0 0.0
  %420 = vmatprep.subr.mxu0 0.0
  %421 = vmatpush2.msra.mxu0 0.0
  %422 = vmatprep.mubr.f32.mxu0 0.0
  %423 = vmatmul.mubr.f32.gmra.mxu0 %v353
  %v424 = vpop.f32.mrf.mxu0
  %v425 = vadd.f32 0.0, %v424
  %v426 = vpop.f32.mrf.mxu0
  %427 = vmatprep.mubr.f32.mxu0 0.0
  %428 = vmatmul.mubr.f32.gmra.mxu0 %v356
  %v429 = vpop.f32.mrf.mxu0
  %v430 = vadd.f32 0.0, %v429
  %v431 = vpop.f32.mrf.mxu0
  %432 = vdwg.mxu0
  %v434 = vsel %vm351, %v349, 0
  %436 = vmatprep.subr.mxu0 0.0
  %437 = vmatpush1.xpose.msra.mxu0 0.0
  %438 = vmatprep.subr.mxu0 0.0
  %439 = vmatpush1.xpose.msra.mxu0 0.0
  %440 = vmatprep.subr.mxu0 0.0
  %441 = vmatpush1.xpose.msra.mxu0 0.0
  %442 = vmatprep.subr.mxu0 0.0
  %443 = vmatpush1.xpose.msra.mxu0 0.0
  %444 = vmatprep.subr.mxu0 0.0
  %445 = vmatpush1.xpose.msra.mxu0 0.0
  %446 = vmatprep.subr.mxu0 0.0
  %447 = vmatpush1.xpose.msra.mxu0 0.0
  %448 = vmatprep.subr.mxu0 0.0
  %449 = vmatpush1.xpose.msra.mxu0 0.0
  %450 = vmatprep.subr.mxu0 0.0
  %451 = vmatpush1.xpose.msra.mxu0 0.0
  %452 = vmatprep.subr.mxu0 0.0
  %453 = vmatpush1.xpose.msra.mxu0 0.0
  %454 = vmatprep.subr.mxu0 0.0
  %455 = vmatpush1.xpose.msra.mxu0 0.0
  %456 = vmatprep.subr.mxu0 0.0
  %457 = vmatpush1.xpose.msra.mxu0 0.0
  %458 = vmatprep.subr.mxu0 0.0
  %459 = vmatpush1.xpose.msra.mxu0 0.0
  %460 = vmatprep.subr.mxu0 0.0
  %461 = vmatpush1.xpose.msra.mxu0 0.0
  %462 = vmatprep.subr.mxu0 0.0
  %463 = vmatpush1.xpose.msra.mxu0 0.0
  %464 = vmatprep.subr.mxu0 0.0
  %465 = vmatpush1.xpose.msra.mxu0 %v356
  %466 = vmatprep.subr.mxu0 0.0
  %467 = vmatpush1.xpose.msra.mxu0 %v353
  %468 = vmatprep.subr.mxu0 0.0
  %469 = vmatpush2.xpose.msra.mxu0 0.0
  %470 = vmatprep.subr.mxu0 0.0
  %471 = vmatpush2.xpose.msra.mxu0 0.0
  %472 = vmatprep.subr.mxu0 0.0
  %473 = vmatpush2.xpose.msra.mxu0 0.0
  %474 = vmatprep.subr.mxu0 0.0
  %475 = vmatpush2.xpose.msra.mxu0 0.0
  %476 = vmatprep.subr.mxu0 0.0
  %477 = vmatpush2.xpose.msra.mxu0 0.0
  %478 = vmatprep.subr.mxu0 0.0
  %479 = vmatpush2.xpose.msra.mxu0 0.0
  %480 = vmatprep.subr.mxu0 0.0
  %481 = vmatpush2.xpose.msra.mxu0 0.0
  %482 = vmatprep.subr.mxu0 0.0
  %483 = vmatpush2.xpose.msra.mxu0 0.0
  %484 = vmatprep.subr.mxu0 0.0
  %485 = vmatpush2.xpose.msra.mxu0 0.0
  %486 = vmatprep.subr.mxu0 0.0
  %487 = vmatpush2.xpose.msra.mxu0 0.0
  %488 = vmatprep.subr.mxu0 0.0
  %489 = vmatpush2.xpose.msra.mxu0 0.0
  %490 = vmatprep.subr.mxu0 0.0
  %491 = vmatpush2.xpose.msra.mxu0 0.0
  %492 = vmatprep.subr.mxu0 0.0
  %493 = vmatpush2.xpose.msra.mxu0 0.0
  %494 = vmatprep.subr.mxu0 0.0
  %495 = vmatpush2.xpose.msra.mxu0 0.0
  %496 = vmatprep.subr.mxu0 0.0
  %497 = vmatpush2.xpose.msra.mxu0 0.0
  %498 = vmatprep.subr.mxu0 0.0
  %499 = vmatpush2.xpose.msra.mxu0 0.0
  %500 = vmatprep.mubr.f32.mxu0 0.0
  %501 = vmatmul.mubr.f32.gmra.mxu0 %v434
  %v502 = vpop.f32.mrf.mxu0
  %v503 = vadd.f32 0.0, %v502
  %v504 = vpop.f32.mrf.mxu0
  %505 = vdwg.mxu0
  %507 = vset.pattern.permute.xlu0 16
  %508 = vperm.xlu0 %507, %v425
  %v509 = vpop.permute.xlu0 %508
  %512 = vset.pattern.permute.xlu0 16
  %513 = vperm.xlu0 %512, %v430
  %v514 = vpop.permute.xlu0 %513
  %v516 = vlaneseq
  %v517 = vshrl.u32 %v516, 7
  %v518 = vsub.s32 0, %v517
  %v519 = vrot.slane %v503, %v518
  %v520 = vadd.f32 %v509, %v519
  %v521 = vadd.f32 %v514, %v519
  %v522 = vxor.u32 %v520, 2147483648
  %v523 = vxor.u32 %v521, 2147483648
  %v524 = vmul.f32 %v522, 1.442695
  %v525 = vpow.pop %v524
  %v526 = vmul.f32 %v523, 1.442695
  %v527 = vpow.pop %v526
  %v528 = vadd.f32 %v525, 1.0
  %v529 = vadd.f32 %v527, 1.0
  %v530 = vrcp.pop %v528
  %v531 = vmul.f32 1.0, %v530
  %v532 = vrcp.pop %v529
  %v533 = vmul.f32 1.0, %v532
  %v534 = vmul.f32 %v531, 1.442695
  %v535 = vpow.pop %v534
  %v536 = vmul.f32 %v533, 1.442695
  %v537 = vpow.pop %v536
  %v538 = vmul.f32 %v20, %v535
  %v539 = vmul.f32 %v21, %v537
  %v540 = vsel %vm223, %v538, 0.0
  %541 = vadd.xlane.f32.xlu0 %v540
  %v542 = vpop.xlane.xlu0 %541
  %v543 = vsel %vm223, %v539, 0.0
  %544 = vadd.xlane.f32.xlu0 %v543
  %v545 = vpop.xlane.xlu0 %544
  %vm546 = vcmp.gt.f32.partialorder %v542, 0.0
  %vm547 = vcmp.gt.f32.partialorder %v545, 0.0
  %v548 = vsel %vm546, %v542, 1.0
  %v549 = vsel %vm547, %v545, 1.0
  %v550 = vrcp.pop %v548
  %v551 = vrcp.pop %v549
  %v552 = vmul.f32 %v548, %v550
  %v553 = vmul.f32 %v549, %v551
  %v554 = vsub.f32 2.0, %v552
  %v555 = vsub.f32 2.0, %v553
  %v556 = vmul.f32 %v550, %v554
  %v557 = vmul.f32 %v551, %v555
  %v559 = vsel %vm223, %v538, 0
  %v562 = vsel %vm223, %v539, 0
  %564 = vmatprep.subr.mxu0 0.0
  %565 = vmatpush1.msra.mxu0 0.0
  %566 = vmatprep.subr.mxu0 0.0
  %567 = vmatpush1.msra.mxu0 0.0
  %568 = vmatprep.subr.mxu0 0.0
  %569 = vmatpush1.msra.mxu0 0.0
  %570 = vmatprep.subr.mxu0 0.0
  %571 = vmatpush1.msra.mxu0 0.0
  %572 = vmatprep.subr.mxu0 0.0
  %573 = vmatpush1.msra.mxu0 0.0
  %574 = vmatprep.subr.mxu0 0.0
  %575 = vmatpush1.msra.mxu0 0.0
  %576 = vmatprep.subr.mxu0 0.0
  %577 = vmatpush1.msra.mxu0 0.0
  %578 = vmatprep.subr.mxu0 0.0
  %579 = vmatpush1.msra.mxu0 0.0
  %580 = vmatprep.subr.mxu0 0.0
  %581 = vmatpush1.msra.mxu0 0.0
  %582 = vmatprep.subr.mxu0 0.0
  %583 = vmatpush1.msra.mxu0 0.0
  %584 = vmatprep.subr.mxu0 0.0
  %585 = vmatpush1.msra.mxu0 0.0
  %586 = vmatprep.subr.mxu0 0.0
  %587 = vmatpush1.msra.mxu0 0.0
  %588 = vmatprep.subr.mxu0 0.0
  %589 = vmatpush1.msra.mxu0 0.0
  %590 = vmatprep.subr.mxu0 0.0
  %591 = vmatpush1.msra.mxu0 0.0
  %592 = vmatprep.subr.mxu0 0.0
  %593 = vmatpush1.msra.mxu0 %v430
  %594 = vmatprep.subr.mxu0 0.0
  %595 = vmatpush1.msra.mxu0 %v425
  %596 = vmatprep.subr.mxu0 0.0
  %597 = vmatpush2.msra.mxu0 0.0
  %598 = vmatprep.subr.mxu0 0.0
  %599 = vmatpush2.msra.mxu0 0.0
  %600 = vmatprep.subr.mxu0 0.0
  %601 = vmatpush2.msra.mxu0 0.0
  %602 = vmatprep.subr.mxu0 0.0
  %603 = vmatpush2.msra.mxu0 0.0
  %604 = vmatprep.subr.mxu0 0.0
  %605 = vmatpush2.msra.mxu0 0.0
  %606 = vmatprep.subr.mxu0 0.0
  %607 = vmatpush2.msra.mxu0 0.0
  %608 = vmatprep.subr.mxu0 0.0
  %609 = vmatpush2.msra.mxu0 0.0
  %610 = vmatprep.subr.mxu0 0.0
  %611 = vmatpush2.msra.mxu0 0.0
  %612 = vmatprep.subr.mxu0 0.0
  %613 = vmatpush2.msra.mxu0 0.0
  %614 = vmatprep.subr.mxu0 0.0
  %615 = vmatpush2.msra.mxu0 0.0
  %616 = vmatprep.subr.mxu0 0.0
  %617 = vmatpush2.msra.mxu0 0.0
  %618 = vmatprep.subr.mxu0 0.0
  %619 = vmatpush2.msra.mxu0 0.0
  %620 = vmatprep.subr.mxu0 0.0
  %621 = vmatpush2.msra.mxu0 0.0
  %622 = vmatprep.subr.mxu0 0.0
  %623 = vmatpush2.msra.mxu0 0.0
  %624 = vmatprep.subr.mxu0 0.0
  %625 = vmatpush2.msra.mxu0 0.0
  %626 = vmatprep.subr.mxu0 0.0
  %627 = vmatpush2.msra.mxu0 0.0
  %628 = vmatprep.mubr.f32.mxu0 0.0
  %629 = vmatmul.mubr.f32.gmra.mxu0 %v559
  %v630 = vpop.f32.mrf.mxu0
  %v631 = vadd.f32 0.0, %v630
  %v632 = vpop.f32.mrf.mxu0
  %633 = vmatprep.mubr.f32.mxu0 0.0
  %634 = vmatmul.mubr.f32.gmra.mxu0 %v562
  %v635 = vpop.f32.mrf.mxu0
  %v636 = vadd.f32 0.0, %v635
  %v637 = vpop.f32.mrf.mxu0
  %638 = vdwg.mxu0
  %v639 = vmul.f32 %v631, %v556
  %v640 = vmul.f32 %v636, %v557
  %v641 = vlaneseq
  %v642 = vshrl.u32 %v641, 7
  %v643 = vsub.s32 0, %v642
  %v644 = vrot.slane %v350, %v643
  %v645 = vadd.f32 %v639, %v644
  %v646 = vadd.f32 %v640, %v644
  %vm647 = vcmp.gt.f32.partialorder %v645, 0.0
  %vm648 = vcmp.gt.f32.partialorder %v646, 0.0
  %v649 = vmul.f32 %v645, 1.442695
  %v650 = vpow.pop %v649
  %v651 = vmul.f32 %v646, 1.442695
  %v652 = vpow.pop %v651
  %v653 = vsub.f32 %v650, 1.0
  %v654 = vsub.f32 %v652, 1.0
  %v655 = vsel %vm647, %v645, %v653
  %v656 = vsel %vm648, %v646, %v654
  %v657 = vld [vmem:[%s0] sm:$0xff]
  %v658 = vld [vmem:[%s0 + $0x8] sm:$0xff]
  %v659 = vadd.f32 %v655, %v657
  %v660 = vadd.f32 %v656, %v658
  %v661 = vld [vmem:[%s4 + $0x60] sm:$0xff]
  %v662 = vld [vmem:[%s4 + $0x68] sm:$0xff]
  %v663 = vld [vmem:[%s4 + $0x74] sm:$0x1]
  %v664 = vld [vmem:[%s4 + $0x75] sm:$0x1]
  %v666 = vsel %vm223, %v659, 0
  %v669 = vsel %vm223, %v660, 0
  %671 = vmatprep.subr.mxu0 0.0
  %672 = vmatpush1.msra.mxu0 0.0
  %673 = vmatprep.subr.mxu0 0.0
  %674 = vmatpush1.msra.mxu0 0.0
  %675 = vmatprep.subr.mxu0 0.0
  %676 = vmatpush1.msra.mxu0 0.0
  %677 = vmatprep.subr.mxu0 0.0
  %678 = vmatpush1.msra.mxu0 0.0
  %679 = vmatprep.subr.mxu0 0.0
  %680 = vmatpush1.msra.mxu0 0.0
  %681 = vmatprep.subr.mxu0 0.0
  %682 = vmatpush1.msra.mxu0 0.0
  %683 = vmatprep.subr.mxu0 0.0
  %684 = vmatpush1.msra.mxu0 0.0
  %685 = vmatprep.subr.mxu0 0.0
  %686 = vmatpush1.msra.mxu0 0.0
  %687 = vmatprep.subr.mxu0 0.0
  %688 = vmatpush1.msra.mxu0 0.0
  %689 = vmatprep.subr.mxu0 0.0
  %690 = vmatpush1.msra.mxu0 0.0
  %691 = vmatprep.subr.mxu0 0.0
  %692 = vmatpush1.msra.mxu0 0.0
  %693 = vmatprep.subr.mxu0 0.0
  %694 = vmatpush1.msra.mxu0 0.0
  %695 = vmatprep.subr.mxu0 0.0
  %696 = vmatpush1.msra.mxu0 0.0
  %697 = vmatprep.subr.mxu0 0.0
  %698 = vmatpush1.msra.mxu0 0.0
  %699 = vmatprep.subr.mxu0 0.0
  %700 = vmatpush1.msra.mxu0 %v662
  %701 = vmatprep.subr.mxu0 0.0
  %702 = vmatpush1.msra.mxu0 %v661
  %703 = vmatprep.subr.mxu0 0.0
  %704 = vmatpush2.msra.mxu0 0.0
  %705 = vmatprep.subr.mxu0 0.0
  %706 = vmatpush2.msra.mxu0 0.0
  %707 = vmatprep.subr.mxu0 0.0
  %708 = vmatpush2.msra.mxu0 0.0
  %709 = vmatprep.subr.mxu0 0.0
  %710 = vmatpush2.msra.mxu0 0.0
  %711 = vmatprep.subr.mxu0 0.0
  %712 = vmatpush2.msra.mxu0 0.0
  %713 = vmatprep.subr.mxu0 0.0
  %714 = vmatpush2.msra.mxu0 0.0
  %715 = vmatprep.subr.mxu0 0.0
  %716 = vmatpush2.msra.mxu0 0.0
  %717 = vmatprep.subr.mxu0 0.0
  %718 = vmatpush2.msra.mxu0 0.0
  %719 = vmatprep.subr.mxu0 0.0
  %720 = vmatpush2.msra.mxu0 0.0
  %721 = vmatprep.subr.mxu0 0.0
  %722 = vmatpush2.msra.mxu0 0.0
  %723 = vmatprep.subr.mxu0 0.0
  %724 = vmatpush2.msra.mxu0 0.0
  %725 = vmatprep.subr.mxu0 0.0
  %726 = vmatpush2.msra.mxu0 0.0
  %727 = vmatprep.subr.mxu0 0.0
  %728 = vmatpush2.msra.mxu0 0.0
  %729 = vmatprep.subr.mxu0 0.0
  %730 = vmatpush2.msra.mxu0 0.0
  %731 = vmatprep.subr.mxu0 0.0
  %732 = vmatpush2.msra.mxu0 0.0
  %733 = vmatprep.subr.mxu0 0.0
  %734 = vmatpush2.msra.mxu0 0.0
  %735 = vmatprep.mubr.f32.mxu0 0.0
  %736 = vmatmul.mubr.f32.gmra.mxu0 %v666
  %v737 = vpop.f32.mrf.mxu0
  %v738 = vadd.f32 0.0, %v737
  %v739 = vpop.f32.mrf.mxu0
  %740 = vmatprep.mubr.f32.mxu0 0.0
  %741 = vmatmul.mubr.f32.gmra.mxu0 %v669
  %v742 = vpop.f32.mrf.mxu0
  %v743 = vadd.f32 0.0, %v742
  %v744 = vpop.f32.mrf.mxu0
  %745 = vdwg.mxu0
  %v747 = vsel %vm223, %v663, 0
  %749 = vmatprep.subr.mxu0 0.0
  %750 = vmatpush1.xpose.msra.mxu0 0.0
  %751 = vmatprep.subr.mxu0 0.0
  %752 = vmatpush1.xpose.msra.mxu0 0.0
  %753 = vmatprep.subr.mxu0 0.0
  %754 = vmatpush1.xpose.msra.mxu0 0.0
  %755 = vmatprep.subr.mxu0 0.0
  %756 = vmatpush1.xpose.msra.mxu0 0.0
  %757 = vmatprep.subr.mxu0 0.0
  %758 = vmatpush1.xpose.msra.mxu0 0.0
  %759 = vmatprep.subr.mxu0 0.0
  %760 = vmatpush1.xpose.msra.mxu0 0.0
  %761 = vmatprep.subr.mxu0 0.0
  %762 = vmatpush1.xpose.msra.mxu0 0.0
  %763 = vmatprep.subr.mxu0 0.0
  %764 = vmatpush1.xpose.msra.mxu0 0.0
  %765 = vmatprep.subr.mxu0 0.0
  %766 = vmatpush1.xpose.msra.mxu0 0.0
  %767 = vmatprep.subr.mxu0 0.0
  %768 = vmatpush1.xpose.msra.mxu0 0.0
  %769 = vmatprep.subr.mxu0 0.0
  %770 = vmatpush1.xpose.msra.mxu0 0.0
  %771 = vmatprep.subr.mxu0 0.0
  %772 = vmatpush1.xpose.msra.mxu0 0.0
  %773 = vmatprep.subr.mxu0 0.0
  %774 = vmatpush1.xpose.msra.mxu0 0.0
  %775 = vmatprep.subr.mxu0 0.0
  %776 = vmatpush1.xpose.msra.mxu0 0.0
  %777 = vmatprep.subr.mxu0 0.0
  %778 = vmatpush1.xpose.msra.mxu0 %v669
  %779 = vmatprep.subr.mxu0 0.0
  %780 = vmatpush1.xpose.msra.mxu0 %v666
  %781 = vmatprep.subr.mxu0 0.0
  %782 = vmatpush2.xpose.msra.mxu0 0.0
  %783 = vmatprep.subr.mxu0 0.0
  %784 = vmatpush2.xpose.msra.mxu0 0.0
  %785 = vmatprep.subr.mxu0 0.0
  %786 = vmatpush2.xpose.msra.mxu0 0.0
  %787 = vmatprep.subr.mxu0 0.0
  %788 = vmatpush2.xpose.msra.mxu0 0.0
  %789 = vmatprep.subr.mxu0 0.0
  %790 = vmatpush2.xpose.msra.mxu0 0.0
  %791 = vmatprep.subr.mxu0 0.0
  %792 = vmatpush2.xpose.msra.mxu0 0.0
  %793 = vmatprep.subr.mxu0 0.0
  %794 = vmatpush2.xpose.msra.mxu0 0.0
  %795 = vmatprep.subr.mxu0 0.0
  %796 = vmatpush2.xpose.msra.mxu0 0.0
  %797 = vmatprep.subr.mxu0 0.0
  %798 = vmatpush2.xpose.msra.mxu0 0.0
  %799 = vmatprep.subr.mxu0 0.0
  %800 = vmatpush2.xpose.msra.mxu0 0.0
  %801 = vmatprep.subr.mxu0 0.0
  %802 = vmatpush2.xpose.msra.mxu0 0.0
  %803 = vmatprep.subr.mxu0 0.0
  %804 = vmatpush2.xpose.msra.mxu0 0.0
  %805 = vmatprep.subr.mxu0 0.0
  %806 = vmatpush2.xpose.msra.mxu0 0.0
  %807 = vmatprep.subr.mxu0 0.0
  %808 = vmatpush2.xpose.msra.mxu0 0.0
  %809 = vmatprep.subr.mxu0 0.0
  %810 = vmatpush2.xpose.msra.mxu0 0.0
  %811 = vmatprep.subr.mxu0 0.0
  %812 = vmatpush2.xpose.msra.mxu0 0.0
  %813 = vmatprep.mubr.f32.mxu0 0.0
  %814 = vmatmul.mubr.f32.gmra.mxu0 %v747
  %v815 = vpop.f32.mrf.mxu0
  %v816 = vadd.f32 0.0, %v815
  %v817 = vpop.f32.mrf.mxu0
  %818 = vdwg.mxu0
  %820 = vset.pattern.permute.xlu0 8
  %821 = vperm.xlu0 %820, %v738
  %v822 = vpop.permute.xlu0 %821
  %825 = vset.pattern.permute.xlu0 8
  %826 = vperm.xlu0 %825, %v743
  %v827 = vpop.permute.xlu0 %826
  %v829 = vlaneseq
  %v830 = vshrl.u32 %v829, 7
  %v831 = vsub.s32 0, %v830
  %v832 = vrot.slane %v816, %v831
  %v833 = vadd.f32 %v822, %v832
  %v834 = vadd.f32 %v827, %v832
  %v835 = vxor.u32 %v833, 2147483648
  %v836 = vxor.u32 %v834, 2147483648
  %v837 = vmul.f32 %v835, 1.442695
  %v838 = vpow.pop %v837
  %v839 = vmul.f32 %v836, 1.442695
  %v840 = vpow.pop %v839
  %v841 = vadd.f32 %v838, 1.0
  %v842 = vadd.f32 %v840, 1.0
  %v843 = vrcp.pop %v841
  %v844 = vmul.f32 1.0, %v843
  %v845 = vrcp.pop %v842
  %v846 = vmul.f32 1.0, %v845
  %v847 = vmul.f32 %v844, 1.442695
  %v848 = vpow.pop %v847
  %v849 = vmul.f32 %v846, 1.442695
  %v850 = vpow.pop %v849
  %v851 = vmul.f32 %v20, %v848
  %v852 = vmul.f32 %v21, %v850
  %v853 = vsel %vm223, %v851, 0.0
  %854 = vadd.xlane.f32.xlu0 %v853
  %v855 = vpop.xlane.xlu0 %854
  %v856 = vsel %vm223, %v852, 0.0
  %857 = vadd.xlane.f32.xlu0 %v856
  %v858 = vpop.xlane.xlu0 %857
  %vm859 = vcmp.gt.f32.partialorder %v855, 0.0
  %vm860 = vcmp.gt.f32.partialorder %v858, 0.0
  %v861 = vsel %vm859, %v855, 1.0
  %v862 = vsel %vm860, %v858, 1.0
  %v863 = vrcp.pop %v861
  %v864 = vrcp.pop %v862
  %v865 = vmul.f32 %v861, %v863
  %v866 = vmul.f32 %v862, %v864
  %v867 = vsub.f32 2.0, %v865
  %v868 = vsub.f32 2.0, %v866
  %v869 = vmul.f32 %v863, %v867
  %v870 = vmul.f32 %v864, %v868
  %v872 = vsel %vm223, %v851, 0
  %v875 = vsel %vm223, %v852, 0
  %877 = vmatprep.subr.mxu0 0.0
  %878 = vmatpush1.msra.mxu0 0.0
  %879 = vmatprep.subr.mxu0 0.0
  %880 = vmatpush1.msra.mxu0 0.0
  %881 = vmatprep.subr.mxu0 0.0
  %882 = vmatpush1.msra.mxu0 0.0
  %883 = vmatprep.subr.mxu0 0.0
  %884 = vmatpush1.msra.mxu0 0.0
  %885 = vmatprep.subr.mxu0 0.0
  %886 = vmatpush1.msra.mxu0 0.0
  %887 = vmatprep.subr.mxu0 0.0
  %888 = vmatpush1.msra.mxu0 0.0
  %889 = vmatprep.subr.mxu0 0.0
  %890 = vmatpush1.msra.mxu0 0.0
  %891 = vmatprep.subr.mxu0 0.0
  %892 = vmatpush1.msra.mxu0 0.0
  %893 = vmatprep.subr.mxu0 0.0
  %894 = vmatpush1.msra.mxu0 0.0
  %895 = vmatprep.subr.mxu0 0.0
  %896 = vmatpush1.msra.mxu0 0.0
  %897 = vmatprep.subr.mxu0 0.0
  %898 = vmatpush1.msra.mxu0 0.0
  %899 = vmatprep.subr.mxu0 0.0
  %900 = vmatpush1.msra.mxu0 0.0
  %901 = vmatprep.subr.mxu0 0.0
  %902 = vmatpush1.msra.mxu0 0.0
  %903 = vmatprep.subr.mxu0 0.0
  %904 = vmatpush1.msra.mxu0 0.0
  %905 = vmatprep.subr.mxu0 0.0
  %906 = vmatpush1.msra.mxu0 %v743
  %907 = vmatprep.subr.mxu0 0.0
  %908 = vmatpush1.msra.mxu0 %v738
  %909 = vmatprep.subr.mxu0 0.0
  %910 = vmatpush2.msra.mxu0 0.0
  %911 = vmatprep.subr.mxu0 0.0
  %912 = vmatpush2.msra.mxu0 0.0
  %913 = vmatprep.subr.mxu0 0.0
  %914 = vmatpush2.msra.mxu0 0.0
  %915 = vmatprep.subr.mxu0 0.0
  %916 = vmatpush2.msra.mxu0 0.0
  %917 = vmatprep.subr.mxu0 0.0
  %918 = vmatpush2.msra.mxu0 0.0
  %919 = vmatprep.subr.mxu0 0.0
  %920 = vmatpush2.msra.mxu0 0.0
  %921 = vmatprep.subr.mxu0 0.0
  %922 = vmatpush2.msra.mxu0 0.0
  %923 = vmatprep.subr.mxu0 0.0
  %924 = vmatpush2.msra.mxu0 0.0
  %925 = vmatprep.subr.mxu0 0.0
  %926 = vmatpush2.msra.mxu0 0.0
  %927 = vmatprep.subr.mxu0 0.0
  %928 = vmatpush2.msra.mxu0 0.0
  %929 = vmatprep.subr.mxu0 0.0
  %930 = vmatpush2.msra.mxu0 0.0
  %931 = vmatprep.subr.mxu0 0.0
  %932 = vmatpush2.msra.mxu0 0.0
  %933 = vmatprep.subr.mxu0 0.0
  %934 = vmatpush2.msra.mxu0 0.0
  %935 = vmatprep.subr.mxu0 0.0
  %936 = vmatpush2.msra.mxu0 0.0
  %937 = vmatprep.subr.mxu0 0.0
  %938 = vmatpush2.msra.mxu0 0.0
  %939 = vmatprep.subr.mxu0 0.0
  %940 = vmatpush2.msra.mxu0 0.0
  %941 = vmatprep.mubr.f32.mxu0 0.0
  %942 = vmatmul.mubr.f32.gmra.mxu0 %v872
  %v943 = vpop.f32.mrf.mxu0
  %v944 = vadd.f32 0.0, %v943
  %v945 = vpop.f32.mrf.mxu0
  %946 = vmatprep.mubr.f32.mxu0 0.0
  %947 = vmatmul.mubr.f32.gmra.mxu0 %v875
  %v948 = vpop.f32.mrf.mxu0
  %v949 = vadd.f32 0.0, %v948
  %v950 = vpop.f32.mrf.mxu0
  %951 = vdwg.mxu0
  %v952 = vmul.f32 %v944, %v869
  %v953 = vmul.f32 %v949, %v870
  %v954 = vlaneseq
  %v955 = vshrl.u32 %v954, 7
  %v956 = vsub.s32 0, %v955
  %v957 = vrot.slane %v664, %v956
  %v958 = vadd.f32 %v952, %v957
  %v959 = vadd.f32 %v953, %v957
  %vm960 = vcmask 64512
  %961 = vst.msk [vmem:[%s5] sm:$0xff] %vm960, %v958
  %962 = vst.msk [vmem:[%s5 + $0x8] sm:$0xff] %vm960, %v959
  // Predicated region
  $region22: #{tpu_custom_call.1} parent=0 // pred_check
    _
  $region23: #{tpu_custom_call.1} parent=0 // pred_check_branch
    %964 = sbr.rel (0) target = $region25
  $region24: #{tpu_custom_call.1} parent=0 // pred_region
    _
  $region25: #{tpu_custom_call.1} parent=0 // pred_fallthru
    _
  // Predicated region
  $region26: #{tpu_custom_call.1} parent=0 // pred_check
    _
  $region27: #{tpu_custom_call.1} parent=0 // pred_check_branch
    %966 = sbr.rel (0) target = $region29
  $region28: #{tpu_custom_call.1} parent=0 // pred_region
    _
  $region29: #{tpu_custom_call.1} parent=0 // pred_fallthru
    _

</llo_original>
